<compile_context>
chip_gen: v7x
topology: tpu7x:2x2x1
jax: 0.10.0
libtpu: 0.0.40
codegen_flags: <defaults>
</compile_context>

<pallas_src>
import jax
import jax.numpy as jnp
from jax import lax
from jax.experimental import pallas as pl
from jax.experimental.pallas import tpu as pltpu

CONTEXT_SIZE = 4   # CBOW context window (2 words each side)
VOCAB = 64
EMBED_DIM = 32
HIDDEN = 128

VOCAB_PAD = ((VOCAB + 127) // 128) * 128   # lane-dense (multiple of 128)
NEG_BIG = -1e30                            # Python float -> wrapper-side only


def cbow_kernel(idx_ref, e1_ref, w2_ref, b2_ref, out_ref):
    # idx_ref : VMEM (B_TILE, CONTEXT_SIZE) int32  context word ids
    # e1_ref  : VMEM (VOCAB_PAD, HIDDEN) bf16      emb @ W1 + b1/CTX (zero-padded rows)
    # w2_ref  : VMEM (HIDDEN, VOCAB_PAD) bf16      zero-padded columns
    # b2_ref  : VMEM (1, VOCAB_PAD) f32            padded lanes = -1e30 (masks log_softmax)
    # out_ref : VMEM (B_TILE, VOCAB_PAD)           log-probabilities (padded lanes junk)
    b_tile, ctx = idx_ref.shape
    vocab_pad = out_ref.shape[1]

    idx = idx_ref[...]                                              # (B_TILE, CTX)
    lane = lax.broadcasted_iota(jnp.int32, (b_tile, vocab_pad), 1)  # lane ids

    # one-hot counts (exact for repeated indices): (B_TILE, VOCAB_PAD)
    counts = jnp.zeros((b_tile, vocab_pad), jnp.float32)
    for i in range(ctx):  # static trip count (CONTEXT_SIZE)
        counts = counts + (idx[:, i:i + 1] == lane).astype(jnp.float32)

    # embedding-sum + linear1 + bias fused: h = counts @ (emb @ W1 + b1/CTX), then ReLU
    h = jnp.dot(counts.astype(jnp.bfloat16), e1_ref[...],
                preferred_element_type=jnp.float32)
    h = jnp.maximum(h, 0.0)

    # linear2; padded vocab lanes get -1e30 from the bias alone (w2 pad cols are 0)
    logits = jnp.dot(h.astype(jnp.bfloat16), w2_ref[...],
                     preferred_element_type=jnp.float32) + b2_ref[...]

    # numerically stable log_softmax over the vocab lanes
    m = jnp.max(logits, axis=-1, keepdims=True)
    shifted = logits - m
    lse = jnp.log(jnp.sum(jnp.exp(shifted), axis=-1, keepdims=True))
    out_ref[...] = (shifted - lse).astype(out_ref.dtype)


def _batch_tiling(B, block_b):
    """Pick (b_tile, b_padded): big tiles, but >=2 tiles when there's enough work."""
    b_round = ((B + 7) // 8) * 8                   # f32 sublane granularity
    b_tile = min(block_b, b_round)
    # v7x has 2 TensorCores: if there is enough work, split into >=2 tiles so the
    # "parallel" batch axis lands on both cores (costs nothing on v5e/v6e).
    if b_round >= 256:
        half = ((b_round // 2 + 7) // 8) * 8
        b_tile = min(b_tile, half)
    b_padded = ((B + b_tile - 1) // b_tile) * b_tile
    return b_tile, b_padded


def cbow_forward_batched(idx_batch, emb, w1, b1, w2, b2, *,
                         block_b=512, out_dtype=jnp.float32):
    """idx_batch: (B, CONTEXT_SIZE) int32 -> (B, VOCAB) log-probs (one CBOW fwd per row)."""
    B = idx_batch.shape[0]

    # Fold embedding table AND bias1 into linear1 (exact: counts sums to CONTEXT_SIZE
    # per row, including padded rows, and ReLU comes after linear1).
    e1 = jnp.dot(emb, w1) + b1 / CONTEXT_SIZE                        # (VOCAB, HIDDEN) f32
    e1_pad = jnp.zeros((VOCAB_PAD, HIDDEN), jnp.bfloat16).at[:VOCAB].set(
        e1.astype(jnp.bfloat16))
    w2_pad = jnp.zeros((HIDDEN, VOCAB_PAD), jnp.bfloat16).at[:, :VOCAB].set(
        w2.astype(jnp.bfloat16))
    # Padded vocab lanes masked through the bias (w2 pad columns are exactly 0).
    b2_pad = jnp.full((1, VOCAB_PAD), NEG_BIG, jnp.float32).at[:, :VOCAB].set(b2)

    b_tile, b_padded = _batch_tiling(B, block_b)
    idx_pad = jnp.zeros((b_padded, CONTEXT_SIZE), jnp.int32).at[:B].set(
        idx_batch.astype(jnp.int32))

    out = pl.pallas_call(
        cbow_kernel,
        out_shape=jax.ShapeDtypeStruct((b_padded, VOCAB_PAD), out_dtype),
        grid=(b_padded // b_tile,),
        in_specs=[
            pl.BlockSpec((b_tile, CONTEXT_SIZE), lambda t: (t, 0)),
            pl.BlockSpec((VOCAB_PAD, HIDDEN), lambda t: (0, 0)),
            pl.BlockSpec((HIDDEN, VOCAB_PAD), lambda t: (0, 0)),
            pl.BlockSpec((1, VOCAB_PAD), lambda t: (0, 0)),
        ],
        out_specs=pl.BlockSpec((b_tile, VOCAB_PAD), lambda t: (t, 0)),
        compiler_params=pltpu.CompilerParams(
            dimension_semantics=("parallel",)),   # shard batch tiles across TCs (v7x)
    )(idx_pad, e1_pad, w2_pad, b2_pad)

    return out[:B, :VOCAB]


def cbow_forward(inputs, emb, w1, b1, w2, b2):
    """Original module semantics: 1-D context ids -> (1, VOCAB) log-probs."""
    # Note: B=1 is launch/DMA-overhead dominated; batch at the caller for throughput.
    return cbow_forward_batched(inputs.astype(jnp.int32)[None, :], emb, w1, b1, w2, b2)


def cbow_reference(inputs, emb, w1, b1, w2, b2):
    embeds = jnp.sum(emb[inputs], axis=0).reshape(1, -1)
    h = jnp.maximum(embeds @ w1 + b1, 0.0)
    logits = h @ w2 + b2
    return jax.nn.log_softmax(logits, axis=1)


if __name__ == "__main__":
    key = jax.random.PRNGKey(0)
    k_emb, k_w1, k_b1, k_w2, k_b2, k_in, k_inb = jax.random.split(key, 7)

    # Deterministic synthetic parameters (shapes from CBOW.__init__).
    emb = jax.random.normal(k_emb, (VOCAB, EMBED_DIM), jnp.float32)            # nn.Embedding
    w1 = jax.random.normal(k_w1, (EMBED_DIM, HIDDEN), jnp.float32) * 0.1       # linear1.weight^T
    b1 = jax.random.normal(k_b1, (1, HIDDEN), jnp.float32) * 0.1               # linear1.bias
    w2 = jax.random.normal(k_w2, (HIDDEN, VOCAB), jnp.float32) * 0.1           # linear2.weight^T
    b2 = jax.random.normal(k_b2, (1, VOCAB), jnp.float32) * 0.1                # linear2.bias

    # --- single-context forward (exact original module semantics) ---
    inputs = jax.random.randint(k_in, (CONTEXT_SIZE,), 0, VOCAB, jnp.int32)
    out1 = jax.block_until_ready(cbow_forward(inputs, emb, w1, b1, w2, b2))
    ref1 = cbow_reference(inputs, emb, w1, b1, w2, b2)
    assert out1.shape == (1, VOCAB)
    # bf16 MXU operands -> relaxed tolerance vs the f32 reference
    assert jnp.allclose(out1, ref1, atol=5e-2, rtol=5e-2), "single-context mismatch"

    # --- batched forward (many contexts per pallas_call) ---
    B = 256
    idx_batch = jax.random.randint(k_inb, (B, CONTEXT_SIZE), 0, VOCAB, jnp.int32)
    out_b = jax.block_until_ready(cbow_forward_batched(idx_batch, emb, w1, b1, w2, b2))
    ref_b = jax.vmap(lambda ids: cbow_reference(ids, emb, w1, b1, w2, b2)[0])(idx_batch)
    assert out_b.shape == (B, VOCAB)
    assert jnp.allclose(out_b, ref_b, atol=5e-2, rtol=5e-2), "batched mismatch"

    # --- optional bf16 output path (halves HBM writeback) ---
    out_bf = jax.block_until_ready(
        cbow_forward_batched(idx_batch, emb, w1, b1, w2, b2, out_dtype=jnp.bfloat16))
    assert out_bf.shape == (B, VOCAB) and out_bf.dtype == jnp.bfloat16
    assert jnp.allclose(out_bf.astype(jnp.float32), ref_b, atol=2.5e-1, rtol=1e-1), \
        "bf16-output mismatch"

    print("KERNEL_OK")
</pallas_src>

<mosaic_0001>
module attributes {stable_mosaic.version = 11 : i64} {
  func.func @cbow_kernel(%arg0: i32, %arg1: memref<8x4xi32, #tpu.memory_space<vmem>>, %arg2: memref<128x128xbf16, #tpu.memory_space<vmem>>, %arg3: memref<128x128xbf16, #tpu.memory_space<vmem>>, %arg4: memref<1x128xf32, #tpu.memory_space<vmem>>, %arg5: memref<8x128xf32, #tpu.memory_space<vmem>>) attributes {dimension_semantics = [#tpu.dimension_semantics<parallel>], iteration_bounds = array<i64: 1>, scalar_prefetch = 0 : i64, scratch_operands = 0 : i64, tpu.core_type = #tpu.core_type<tc>, window_params = [{transform_indices = @transform_0, window_bounds = array<i64: 8, 4>}, {pipeline_mode = #tpu.pipeline_mode<synchronous>, transform_indices = @transform_1, window_bounds = array<i64: 128, 128>}, {pipeline_mode = #tpu.pipeline_mode<synchronous>, transform_indices = @transform_2, window_bounds = array<i64: 128, 128>}, {pipeline_mode = #tpu.pipeline_mode<synchronous>, transform_indices = @transform_3, window_bounds = array<i64: 1, 128>}, {transform_indices = @transform_4, window_bounds = array<i64: 8, 128>}]} {
    %c0 = arith.constant 0 : index
    %c0_0 = arith.constant 0 : index
    %0 = vector.load %arg1[%c0, %c0_0] : memref<8x4xi32, #tpu.memory_space<vmem>>, vector<8x4xi32>
    %1 = tpu.iota {dimensions = array<i32: 1>} : vector<8x128xi32>
    %cst = arith.constant 0.000000e+00 : f32
    %2 = vector.broadcast %cst : f32 to vector<8x128xf32>
    %3 = vector.extract_strided_slice %0 {offsets = [0, 0], sizes = [8, 1], strides = [1, 1]} : vector<8x4xi32> to vector<8x1xi32>
    %4 = vector.broadcast %3 : vector<8x1xi32> to vector<8x128xi32>
    %5 = arith.cmpi eq, %4, %1 : vector<8x128xi32>
    %6 = arith.extui %5 : vector<8x128xi1> to vector<8x128xi32>
    %7 = arith.sitofp %6 : vector<8x128xi32> to vector<8x128xf32>
    %8 = arith.addf %2, %7 : vector<8x128xf32>
    %9 = vector.extract_strided_slice %0 {offsets = [0, 1], sizes = [8, 1], strides = [1, 1]} : vector<8x4xi32> to vector<8x1xi32>
    %10 = vector.broadcast %9 : vector<8x1xi32> to vector<8x128xi32>
    %11 = arith.cmpi eq, %10, %1 : vector<8x128xi32>
    %12 = arith.extui %11 : vector<8x128xi1> to vector<8x128xi32>
    %13 = arith.sitofp %12 : vector<8x128xi32> to vector<8x128xf32>
    %14 = arith.addf %8, %13 : vector<8x128xf32>
    %15 = vector.extract_strided_slice %0 {offsets = [0, 2], sizes = [8, 1], strides = [1, 1]} : vector<8x4xi32> to vector<8x1xi32>
    %16 = vector.broadcast %15 : vector<8x1xi32> to vector<8x128xi32>
    %17 = arith.cmpi eq, %16, %1 : vector<8x128xi32>
    %18 = arith.extui %17 : vector<8x128xi1> to vector<8x128xi32>
    %19 = arith.sitofp %18 : vector<8x128xi32> to vector<8x128xf32>
    %20 = arith.addf %14, %19 : vector<8x128xf32>
    %21 = vector.extract_strided_slice %0 {offsets = [0, 3], sizes = [8, 1], strides = [1, 1]} : vector<8x4xi32> to vector<8x1xi32>
    %22 = vector.broadcast %21 : vector<8x1xi32> to vector<8x128xi32>
    %23 = arith.cmpi eq, %22, %1 : vector<8x128xi32>
    %24 = arith.extui %23 : vector<8x128xi1> to vector<8x128xi32>
    %25 = arith.sitofp %24 : vector<8x128xi32> to vector<8x128xf32>
    %26 = arith.addf %20, %25 : vector<8x128xf32>
    %27 = arith.truncf %26 : vector<8x128xf32> to vector<8x128xbf16>
    %c0_1 = arith.constant 0 : index
    %c0_2 = arith.constant 0 : index
    %28 = vector.load %arg2[%c0_1, %c0_2] : memref<128x128xbf16, #tpu.memory_space<vmem>>, vector<128x128xbf16>
    %cst_3 = arith.constant dense<0.000000e+00> : vector<8x128xf32>
    %29 = tpu.matmul %27, %28, %cst_3 {dimension_numbers = #tpu.dot_dimension_numbers<[1], [0], [0], [1], [0, 0, 1, 1], [], []>} : vector<8x128xbf16>, vector<128x128xbf16>, vector<8x128xf32> -> vector<8x128xf32>
    %cst_4 = arith.constant 0.000000e+00 : f32
    %30 = vector.broadcast %cst_4 : f32 to vector<8x128xf32>
    %31 = arith.maximumf %29, %30 : vector<8x128xf32>
    %32 = arith.truncf %31 : vector<8x128xf32> to vector<8x128xbf16>
    %c0_5 = arith.constant 0 : index
    %c0_6 = arith.constant 0 : index
    %33 = vector.load %arg3[%c0_5, %c0_6] : memref<128x128xbf16, #tpu.memory_space<vmem>>, vector<128x128xbf16>
    %cst_7 = arith.constant dense<0.000000e+00> : vector<8x128xf32>
    %34 = tpu.matmul %32, %33, %cst_7 {dimension_numbers = #tpu.dot_dimension_numbers<[1], [0], [0], [1], [0, 0, 1, 1], [], []>} : vector<8x128xbf16>, vector<128x128xbf16>, vector<8x128xf32> -> vector<8x128xf32>
    %c0_8 = arith.constant 0 : index
    %c0_9 = arith.constant 0 : index
    %35 = vector.load %arg4[%c0_8, %c0_9] : memref<1x128xf32, #tpu.memory_space<vmem>>, vector<1x128xf32>
    %36 = vector.broadcast %35 : vector<1x128xf32> to vector<8x128xf32>
    %37 = arith.addf %34, %36 : vector<8x128xf32>
    %cst_10 = arith.constant dense<0xFF800000> : vector<8xf32>
    %38 = vector.multi_reduction <maximumf>, %37, %cst_10 [1] : vector<8x128xf32> to vector<8xf32>
    %39 = vector.shape_cast %38 : vector<8xf32> to vector<8x1xf32>
    %40 = vector.broadcast %39 : vector<8x1xf32> to vector<8x128xf32>
    %41 = arith.subf %37, %40 : vector<8x128xf32>
    %42 = math.exp %41 : vector<8x128xf32>
    %cst_11 = arith.constant dense<0.000000e+00> : vector<8xf32>
    %43 = vector.multi_reduction <add>, %42, %cst_11 [1] : vector<8x128xf32> to vector<8xf32>
    %44 = vector.shape_cast %43 : vector<8xf32> to vector<8x1xf32>
    %45 = math.log %44 : vector<8x1xf32>
    %46 = vector.broadcast %45 : vector<8x1xf32> to vector<8x128xf32>
    %47 = arith.subf %41, %46 : vector<8x128xf32>
    %c0_12 = arith.constant 0 : index
    %c0_13 = arith.constant 0 : index
    %48 = vector.load %arg5[%c0_12, %c0_13] : memref<8x128xf32, #tpu.memory_space<vmem>>, vector<8x128xf32>
    tpu.vector_store %arg5[%c0_12, %c0_13], %47 {strides = array<i32>} : memref<8x128xf32, #tpu.memory_space<vmem>>, vector<8x128xf32>,
    return
  }
  func.func @transform_0(%arg0: i32) -> (i32, i32) {
    %c0_i32 = arith.constant 0 : i32
    %c0_i32_0 = arith.constant 0 : i32
    return %arg0, %c0_i32 : i32, i32
  }
  func.func @transform_1(%arg0: i32) -> (i32, i32) {
    %c0_i32 = arith.constant 0 : i32
    %c0_i32_0 = arith.constant 0 : i32
    %c0_i32_1 = arith.constant 0 : i32
    return %c0_i32, %c0_i32_0 : i32, i32
  }
  func.func @transform_2(%arg0: i32) -> (i32, i32) {
    %c0_i32 = arith.constant 0 : i32
    %c0_i32_0 = arith.constant 0 : i32
    %c0_i32_1 = arith.constant 0 : i32
    return %c0_i32, %c0_i32_0 : i32, i32
  }
  func.func @transform_3(%arg0: i32) -> (i32, i32) {
    %c0_i32 = arith.constant 0 : i32
    %c0_i32_0 = arith.constant 0 : i32
    %c0_i32_1 = arith.constant 0 : i32
    return %c0_i32, %c0_i32_0 : i32, i32
  }
  func.func @transform_4(%arg0: i32) -> (i32, i32) {
    %c0_i32 = arith.constant 0 : i32
    %c0_i32_0 = arith.constant 0 : i32
    return %arg0, %c0_i32 : i32, i32
  }
}

</mosaic_0001>

<llo_original>
// kernel: tpu_custom_call.1
$region0: #{tpu_custom_call.1}
  #allocation0 [shape = 'u32[]', space=smem, size = 0x4, offset = 0x4, fixed_abs, tag = 'smem constant byte address 0x4 - core index']
  #allocation1 [shape = 'u32[144,128]{1,0:T(1,128)}', space=vmem, size = 0x12000, scoped, tag = 'internal scratch']
  %s0 = inlined_call_operand.vmem [shape: s32[8,4], index: 0, kind: input, shape index: {}]
  %s1 = inlined_call_operand.hbm [shape: bf16[128,128], index: 1, kind: input, shape index: {}]
  %s2 = inlined_call_operand.hbm [shape: bf16[128,128], index: 2, kind: input, shape index: {}]
  %s3 = inlined_call_operand.vmem [shape: f32[1,128], index: 3, kind: input, shape index: {}]
  %s4 = inlined_call_operand.hbm [shape: f32[8,128], index: 4, kind: output, shape index: {}]
  %s5 = sld [smem:[#allocation0]]
  $region34: #{tpu_custom_call.1} parent=0
    _
  %s7 = ssub.s32 1, %s5
  %s8 = scalar_select 0, %s7, %s5
  $region1: #{tpu_custom_call.1} parent=0
    #allocation2 [shape = 'u8[32768]{0}', space=vmem, size = 0x8000, scoped, tag = 'input window, operand 1, single buffered']
    #allocation3 [shape = 's32[1]{0}', space=sflag, size = 0x4, scoped, tag = 'scoped memory for tpu_custom_call.1']
    #allocation4 [shape = 's32[1]{0}', space=sflag, size = 0x4, scoped, tag = 'scoped memory for tpu_custom_call.1']
    #allocation5 [shape = 'u8[32768]{0}', space=vmem, size = 0x8000, scoped, tag = 'input window, operand 2, single buffered']
    #allocation6 [shape = 's32[1]{0}', space=sflag, size = 0x4, scoped, tag = 'scoped memory for tpu_custom_call.1']
    #allocation7 [shape = 'u8[4096]{0}', space=vmem, size = 0x1000, scoped, tag = 'output window, operand 0, single buffered']
    %9 = vsyncpa [#allocation3], 0
    %10 = vsyncpa [#allocation6], 0
    %11 = vsyncpa [#allocation4], 0
    // Predicated region
    $region2: #{tpu_custom_call.1} parent=1 // pred_check
      _
    $region3: #{tpu_custom_call.1} parent=1 // pred_check_branch
      %13 = sbr.rel (0) target = $region5
    $region4: #{tpu_custom_call.1} parent=1 // pred_region
      _
    $region5: #{tpu_custom_call.1} parent=1 // pred_fallthru
      _
    // Predicated region
    $region6: #{tpu_custom_call.1} parent=1 // pred_check
      _
    $region7: #{tpu_custom_call.1} parent=1 // pred_check_branch
      %15 = sbr.rel (0) target = $region9
    $region8: #{tpu_custom_call.1} parent=1 // pred_region
      %s17 = ssub.s32 1024, 1024
      %18 = vsyncadd [#allocation3], %s17
      %s19 = sshll.u32 [#allocation2], 4
      %s20 = int_to_ptr.vmem [resolvable:$true] %s19
      %25 = dma.hbm_to_vmem [thread:$0]  %s1, 1024, %s20, [#allocation3], 64, 64, 4
    $region9: #{tpu_custom_call.1} parent=1 // pred_fallthru
      _
    // Predicated region
    $region10: #{tpu_custom_call.1} parent=1 // pred_check
      _
    $region11: #{tpu_custom_call.1} parent=1 // pred_check_branch
      %27 = sbr.rel (0) target = $region13
    $region12: #{tpu_custom_call.1} parent=1 // pred_region
      %s29 = ssub.s32 1024, 1024
      %30 = vsyncadd [#allocation6], %s29
      %s31 = sshll.u32 [#allocation5], 4
      %s32 = int_to_ptr.vmem [resolvable:$true] %s31
      %37 = dma.hbm_to_vmem [thread:$0]  %s2, 1024, %s32, [#allocation6], 64, 64, 4
    $region13: #{tpu_custom_call.1} parent=1 // pred_fallthru
      _
    // Predicated region
    $region14: #{tpu_custom_call.1} parent=1 // pred_check
      _
    $region15: #{tpu_custom_call.1} parent=1 // pred_check_branch
      %39 = sbr.rel (0) target = $region17
    $region16: #{tpu_custom_call.1} parent=1 // pred_region
      _
    $region17: #{tpu_custom_call.1} parent=1 // pred_fallthru
      _
    // Predicated region
    $region18: #{tpu_custom_call.1} parent=1 // pred_check
      _
    $region19: #{tpu_custom_call.1} parent=1 // pred_check_branch
      %41 = sbr.rel (0) target = $region21
    $region20: #{tpu_custom_call.1} parent=1 // pred_region
      %42 = dma.done [#allocation3], 1024
    $region21: #{tpu_custom_call.1} parent=1 // pred_fallthru
      _
    // Predicated region
    $region22: #{tpu_custom_call.1} parent=1 // pred_check
      _
    $region23: #{tpu_custom_call.1} parent=1 // pred_check_branch
      %44 = sbr.rel (0) target = $region25
    $region24: #{tpu_custom_call.1} parent=1 // pred_region
      %45 = dma.done [#allocation6], 1024
    $region25: #{tpu_custom_call.1} parent=1 // pred_fallthru
      _
    %v47 = vld [vmem:[%s0] sm:$0xff]
    %v48 = vlaneseq
    %v49 = vand.u32 %v48, 127
    %50 = vset.pattern.permute.xlu0 0
    %51 = vperm.xlu0 %50, %v47
    %v52 = vpop.permute.xlu0 %51
    %vm53 = vcmp.eq.s32.totalorder %v52, %v49
    %v54 = vsel %vm53, 1, 0
    %v55 = vcvt.s32.f32 %v54
    %v56 = vadd.f32 %v55, 0.0
    %57 = vset.pattern.permute.xlu0 1
    %58 = vperm.xlu0 %57, %v47
    %v59 = vpop.permute.xlu0 %58
    %vm60 = vcmp.eq.s32.totalorder %v59, %v49
    %v61 = vsel %vm60, 1, 0
    %v62 = vcvt.s32.f32 %v61
    %v63 = vadd.f32 %v56, %v62
    %64 = vset.pattern.permute.xlu0 2
    %65 = vperm.xlu0 %64, %v47
    %v66 = vpop.permute.xlu0 %65
    %vm67 = vcmp.eq.s32.totalorder %v66, %v49
    %v68 = vsel %vm67, 1, 0
    %v69 = vcvt.s32.f32 %v68
    %v70 = vadd.f32 %v63, %v69
    %71 = vset.pattern.permute.xlu0 3
    %72 = vperm.xlu0 %71, %v47
    %v73 = vpop.permute.xlu0 %72
    %vm74 = vcmp.eq.s32.totalorder %v73, %v49
    %v75 = vsel %vm74, 1, 0
    %v76 = vcvt.s32.f32 %v75
    %v77 = vadd.f32 %v70, %v76
    %v78 = vpack.c.bf16 %v77, %v77
    %v79 = vld [vmem:[#allocation2] sm:$0xf]
    %v80 = vld [vmem:[#allocation2 + $0x4] sm:$0xf]
    %v81 = vld [vmem:[#allocation2 + $0x8] sm:$0xf]
    %v82 = vld [vmem:[#allocation2 + $0xc] sm:$0xf]
    %v83 = vld [vmem:[#allocation2 + $0x10] sm:$0xf]
    %v84 = vld [vmem:[#allocation2 + $0x14] sm:$0xf]
    %v85 = vld [vmem:[#allocation2 + $0x18] sm:$0xf]
    %v86 = vld [vmem:[#allocation2 + $0x1c] sm:$0xf]
    %v87 = vld [vmem:[#allocation2 + $0x20] sm:$0xf]
    %v88 = vld [vmem:[#allocation2 + $0x24] sm:$0xf]
    %v89 = vld [vmem:[#allocation2 + $0x28] sm:$0xf]
    %v90 = vld [vmem:[#allocation2 + $0x2c] sm:$0xf]
    %v91 = vld [vmem:[#allocation2 + $0x30] sm:$0xf]
    %v92 = vld [vmem:[#allocation2 + $0x34] sm:$0xf]
    %v93 = vld [vmem:[#allocation2 + $0x38] sm:$0xf]
    %v94 = vld [vmem:[#allocation2 + $0x3c] sm:$0xf]
    %v111 = vunpack.c.l.b16 %v79
    %v112 = vunpack.c.l.b16 %v80
    %v113 = vunpack.c.l.b16 %v81
    %v114 = vunpack.c.l.b16 %v82
    %v115 = vunpack.c.l.b16 %v83
    %v116 = vunpack.c.l.b16 %v84
    %v117 = vunpack.c.l.b16 %v85
    %v118 = vunpack.c.l.b16 %v86
    %v119 = vunpack.c.l.b16 %v87
    %v120 = vunpack.c.l.b16 %v88
    %v121 = vunpack.c.l.b16 %v89
    %v122 = vunpack.c.l.b16 %v90
    %v123 = vunpack.c.l.b16 %v91
    %v124 = vunpack.c.l.b16 %v92
    %v125 = vunpack.c.l.b16 %v93
    %v126 = vunpack.c.l.b16 %v94
    %v127 = vpack.c.b16 %v112, %v111
    %v128 = vpack.c.b16 %v114, %v113
    %v129 = vpack.c.b16 %v116, %v115
    %v130 = vpack.c.b16 %v118, %v117
    %v131 = vpack.c.b16 %v120, %v119
    %v132 = vpack.c.b16 %v122, %v121
    %v133 = vpack.c.b16 %v124, %v123
    %v134 = vpack.c.b16 %v126, %v125
    %143 = vmatprep.subr.bf16.mxu0 0
    %144 = vmatpush1.bf16.msra.mxu0 %v127
    %145 = vmatprep.subr.bf16.mxu0 0
    %146 = vmatpush1.bf16.msra.mxu0 %v128
    %147 = vmatprep.subr.bf16.mxu0 0
    %148 = vmatpush1.bf16.msra.mxu0 %v129
    %149 = vmatprep.subr.bf16.mxu0 0
    %150 = vmatpush1.bf16.msra.mxu0 %v130
    %151 = vmatprep.subr.bf16.mxu0 0
    %152 = vmatpush1.bf16.msra.mxu0 %v131
    %153 = vmatprep.subr.bf16.mxu0 0
    %154 = vmatpush1.bf16.msra.mxu0 %v132
    %155 = vmatprep.subr.bf16.mxu0 0
    %156 = vmatpush1.bf16.msra.mxu0 %v133
    %157 = vmatprep.subr.bf16.mxu0 0
    %158 = vmatpush1.bf16.msra.mxu0 %v134
    %159 = vmatprep.subr.bf16.mxu0 0
    %160 = vmatpush1.bf16.msra.mxu0 0
    %161 = vmatprep.subr.bf16.mxu0 0
    %162 = vmatpush1.bf16.msra.mxu0 0
    %163 = vmatprep.subr.bf16.mxu0 0
    %164 = vmatpush1.bf16.msra.mxu0 0
    %165 = vmatprep.subr.bf16.mxu0 0
    %166 = vmatpush1.bf16.msra.mxu0 0
    %167 = vmatprep.subr.bf16.mxu0 0
    %168 = vmatpush1.bf16.msra.mxu0 0
    %169 = vmatprep.subr.bf16.mxu0 0
    %170 = vmatpush1.bf16.msra.mxu0 0
    %171 = vmatprep.subr.bf16.mxu0 0
    %172 = vmatpush1.bf16.msra.mxu0 0
    %173 = vmatprep.subr.bf16.mxu0 0
    %174 = vmatpush1.bf16.msra.mxu0 0
    %175 = vmatprep.mubr.bf16.mxu0 0
    %176 = vmatmul.mubr.bf16.gmra.mrb[0].mxu0 %v78
    %v177 = vpop.f32.mrb[0].mxu0
    %v178 = vadd.f32 0.0, %v177
    %v179 = vpop.f32.mrb[0].mxu0
    %v180 = vpop.f32.mrb[0].mxu0
    %v181 = vpop.f32.mrb[0].mxu0
    %182 = vdwg.mxu0
    %v183 = vmax.f32 %v178, 0.0
    %v184 = vpack.c.bf16 %v183, %v183
    %v185 = vld [vmem:[#allocation5] sm:$0xf]
    %v186 = vld [vmem:[#allocation5 + $0x4] sm:$0xf]
    %v187 = vld [vmem:[#allocation5 + $0x8] sm:$0xf]
    %v188 = vld [vmem:[#allocation5 + $0xc] sm:$0xf]
    %v189 = vld [vmem:[#allocation5 + $0x10] sm:$0xf]
    %v190 = vld [vmem:[#allocation5 + $0x14] sm:$0xf]
    %v191 = vld [vmem:[#allocation5 + $0x18] sm:$0xf]
    %v192 = vld [vmem:[#allocation5 + $0x1c] sm:$0xf]
    %v193 = vld [vmem:[#allocation5 + $0x20] sm:$0xf]
    %v194 = vld [vmem:[#allocation5 + $0x24] sm:$0xf]
    %v195 = vld [vmem:[#allocation5 + $0x28] sm:$0xf]
    %v196 = vld [vmem:[#allocation5 + $0x2c] sm:$0xf]
    %v197 = vld [vmem:[#allocation5 + $0x30] sm:$0xf]
    %v198 = vld [vmem:[#allocation5 + $0x34] sm:$0xf]
    %v199 = vld [vmem:[#allocation5 + $0x38] sm:$0xf]
    %v200 = vld [vmem:[#allocation5 + $0x3c] sm:$0xf]
    %v201 = vld [vmem:[%s3] sm:$0x1]
    %v203 = vlaneseq
    %v204 = vshrl.u32 %v203, 7
    %v205 = vsub.s32 0, %v204
    %v206 = vrot.slane %v201, %v205
    %v224 = vunpack.c.l.b16 %v185
    %v225 = vunpack.c.l.b16 %v186
    %v226 = vunpack.c.l.b16 %v187
    %v227 = vunpack.c.l.b16 %v188
    %v228 = vunpack.c.l.b16 %v189
    %v229 = vunpack.c.l.b16 %v190
    %v230 = vunpack.c.l.b16 %v191
    %v231 = vunpack.c.l.b16 %v192
    %v232 = vunpack.c.l.b16 %v193
    %v233 = vunpack.c.l.b16 %v194
    %v234 = vunpack.c.l.b16 %v195
    %v235 = vunpack.c.l.b16 %v196
    %v236 = vunpack.c.l.b16 %v197
    %v237 = vunpack.c.l.b16 %v198
    %v238 = vunpack.c.l.b16 %v199
    %v239 = vunpack.c.l.b16 %v200
    %v240 = vpack.c.b16 %v225, %v224
    %v241 = vpack.c.b16 %v227, %v226
    %v242 = vpack.c.b16 %v229, %v228
    %v243 = vpack.c.b16 %v231, %v230
    %v244 = vpack.c.b16 %v233, %v232
    %v245 = vpack.c.b16 %v235, %v234
    %v246 = vpack.c.b16 %v237, %v236
    %v247 = vpack.c.b16 %v239, %v238
    %256 = vmatprep.subr.bf16.mxu0 0
    %257 = vmatpush1.bf16.msra.mxu0 %v240
    %258 = vmatprep.subr.bf16.mxu0 0
    %259 = vmatpush1.bf16.msra.mxu0 %v241
    %260 = vmatprep.subr.bf16.mxu0 0
    %261 = vmatpush1.bf16.msra.mxu0 %v242
    %262 = vmatprep.subr.bf16.mxu0 0
    %263 = vmatpush1.bf16.msra.mxu0 %v243
    %264 = vmatprep.subr.bf16.mxu0 0
    %265 = vmatpush1.bf16.msra.mxu0 %v244
    %266 = vmatprep.subr.bf16.mxu0 0
    %267 = vmatpush1.bf16.msra.mxu0 %v245
    %268 = vmatprep.subr.bf16.mxu0 0
    %269 = vmatpush1.bf16.msra.mxu0 %v246
    %270 = vmatprep.subr.bf16.mxu0 0
    %271 = vmatpush1.bf16.msra.mxu0 %v247
    %272 = vmatprep.subr.bf16.mxu0 0
    %273 = vmatpush1.bf16.msra.mxu0 0
    %274 = vmatprep.subr.bf16.mxu0 0
    %275 = vmatpush1.bf16.msra.mxu0 0
    %276 = vmatprep.subr.bf16.mxu0 0
    %277 = vmatpush1.bf16.msra.mxu0 0
    %278 = vmatprep.subr.bf16.mxu0 0
    %279 = vmatpush1.bf16.msra.mxu0 0
    %280 = vmatprep.subr.bf16.mxu0 0
    %281 = vmatpush1.bf16.msra.mxu0 0
    %282 = vmatprep.subr.bf16.mxu0 0
    %283 = vmatpush1.bf16.msra.mxu0 0
    %284 = vmatprep.subr.bf16.mxu0 0
    %285 = vmatpush1.bf16.msra.mxu0 0
    %286 = vmatprep.subr.bf16.mxu0 0
    %287 = vmatpush1.bf16.msra.mxu0 0
    %288 = vmatprep.mubr.bf16.mxu0 0
    %289 = vmatmul.mubr.bf16.gmra.mrb[0].mxu0 %v184
    %v290 = vpop.f32.mrb[0].mxu0
    %v291 = vadd.f32 %v206, %v290
    %v292 = vpop.f32.mrb[0].mxu0
    %v293 = vpop.f32.mrb[0].mxu0
    %v294 = vpop.f32.mrb[0].mxu0
    %295 = vdwg.mxu0
    %296 = vmax.xlane.f32.xlu0 %v291
    %v297 = vpop.xlane.xlu0 %296
    %v298 = vsub.f32 %v291, %v297
    %v299 = vmul.f32 %v298, 1.442695
    %v300 = vpow.pop %v299
    %301 = vadd.xlane.f32.xlu0 %v300
    %v302 = vpop.xlane.xlu0 %301
    %v303 = vlog2.pop %v302
    %v304 = vmul.f32 %v303, 0.6931472
    %v305 = vsub.f32 %v298, %v304
    %306 = vst [vmem:[#allocation7] sm:$0xff] %v305
    // Predicated region
    $region26: #{tpu_custom_call.1} parent=1 // pred_check
      _
    $region27: #{tpu_custom_call.1} parent=1 // pred_check_branch
      %308 = sbr.rel (0) target = $region29
    $region28: #{tpu_custom_call.1} parent=1 // pred_region
      %s310 = ssub.s32 128, 128
      %311 = vsyncadd [#allocation4], %s310
      %s313 = sshll.u32 [#allocation7], 4
      %s314 = int_to_ptr.vmem [resolvable:$true] %s313
      %316 = dma.vmem_to_hbm [thread:$0]  %s314, 128, %s4, [#allocation4]
    $region29: #{tpu_custom_call.1} parent=1 // pred_fallthru
      _
    // Predicated region
    $region30: #{tpu_custom_call.1} parent=1 // pred_check
      _
    $region31: #{tpu_custom_call.1} parent=1 // pred_check_branch
      %318 = sbr.rel (0) target = $region33
    $region32: #{tpu_custom_call.1} parent=1 // pred_region
      %319 = dma.done [#allocation4], 128
    $region33: #{tpu_custom_call.1} parent=1 // pred_fallthru
      _
    %320 = vsyncpa [#allocation3], 1
    %321 = vsyncpa [#allocation6], 1
    %322 = vsyncpa [#allocation4], 1

</llo_original>
